<compile_context>
chip_gen: v7x
topology: tpu7x:2x2x1
jax: 0.10.0
libtpu: 0.0.40
codegen_flags: <defaults>
</compile_context>

<pallas_src>
import math

import jax
import jax.numpy as jnp
from jax.experimental import pallas as pl
from jax.experimental.pallas import tpu as pltpu


def _upsample1d_kernel(x_ref, w_ref, b_ref, o_ref):
    # x_ref: (1, L+2, C) zero-padded input, channels-last
    # w_ref: (4, C, C)   tap matrices (C_in, C_out), tap index = kernel position
    # b_ref: (1, C)      bias (f32)
    # o_ref: (1, L, 2C)  lanes [0:C] = even outputs y[2j], lanes [C:2C] = y[2j+1]
    L = o_ref.shape[1]
    C = o_ref.shape[2] // 2

    x_prev = x_ref[0, 0:L, :]        # x[j-1]  (zero row at j = 0)
    x_cur = x_ref[0, 1:L + 1, :]     # x[j]
    x_next = x_ref[0, 2:L + 2, :]    # x[j+1]  (zero row at j = L-1)
    bias = b_ref[...]                # (1, C), broadcasts over rows

    y_even = (jnp.dot(x_cur, w_ref[1], preferred_element_type=jnp.float32)
              + jnp.dot(x_prev, w_ref[3], preferred_element_type=jnp.float32)
              + bias)
    y_odd = (jnp.dot(x_next, w_ref[0], preferred_element_type=jnp.float32)
             + jnp.dot(x_cur, w_ref[2], preferred_element_type=jnp.float32)
             + bias)

    if C % 128 == 0:
        # Two lane-aligned, unmasked C-wide stores; no (L, 2C) f32 temporary.
        o_ref[0, :, 0:C] = y_even.astype(o_ref.dtype)
        o_ref[0, :, C:2 * C] = y_odd.astype(o_ref.dtype)
    else:
        # Small / unaligned C: one dense 2C-wide store beats two masked ones.
        o_ref[0, :, :] = jnp.concatenate([y_even, y_odd], axis=-1).astype(o_ref.dtype)


def upsample1d_pallas_cl(x_blc: jax.Array, w: jax.Array, b: jax.Array) -> jax.Array:
    """Channels-last core: x (B, L, C) -> y (B, 2L, C).  No layout passes.

    w: (C_in, C_out, 4) PyTorch ConvTranspose1d layout, b: (C_out,).
    """
    B, L, C = x_blc.shape
    assert w.shape == (C, C, 4) and b.shape == (C,)

    # Single haloed input: zero-pad L by one on each side.  Padding per batch
    # keeps batch seams correct (halo never bleeds across batches).
    xpad = jnp.pad(x_blc, ((0, 0), (1, 1), (0, 0)))            # (B, L+2, C)
    w_taps = jnp.transpose(w, (2, 0, 1)).astype(x_blc.dtype)   # (4, C_in, C_out)
    bias = b.reshape(1, C).astype(jnp.float32)

    itemsize = jnp.dtype(x_blc.dtype).itemsize
    cost = pl.CostEstimate(
        flops=8 * B * L * C * C,
        transcendentals=0,
        bytes_accessed=(B * (L + 2) * C + 4 * C * C + B * L * 2 * C) * itemsize
        + 4 * C,
    )

    # Grid-invariant operands: single-buffer them (they never change across
    # grid steps; default double-buffering only wastes VMEM).
    const = dict(pipeline_mode=pl.Buffered(1))

    y = pl.pallas_call(
        _upsample1d_kernel,
        out_shape=jax.ShapeDtypeStruct((B, L, 2 * C), x_blc.dtype),
        grid_spec=pltpu.PrefetchScalarGridSpec(
            num_scalar_prefetch=0,
            grid=(B,),
            in_specs=[
                pl.BlockSpec((1, L + 2, C), lambda bb: (bb, 0, 0)),   # haloed x
                pl.BlockSpec((4, C, C), lambda bb: (0, 0, 0), **const),
                pl.BlockSpec((1, C), lambda bb: (0, 0), **const),
            ],
            out_specs=pl.BlockSpec((1, L, 2 * C), lambda bb: (bb, 0, 0)),
        ),
        compiler_params=pltpu.CompilerParams(
            dimension_semantics=("parallel",),
        ),
        cost_estimate=cost,
    )(xpad, w_taps, bias)

    # (B, L, 2C) == (B, L, 2, C) row-major, so this interleave is a free view.
    return y.reshape(B, 2 * L, C)


def upsample1d_pallas(x: jax.Array, w: jax.Array, b: jax.Array) -> jax.Array:
    """PyTorch-layout wrapper: x (B, C, L) -> (B, C, 2L).

    The two transposes below are interface-only; a channels-last pipeline
    should call `upsample1d_pallas_cl` directly and skip them entirely.
    """
    y_blc = upsample1d_pallas_cl(jnp.transpose(x, (0, 2, 1)), w, b)
    return jnp.transpose(y_blc, (0, 2, 1))


class Upsample1dPallas:
    """JAX/Pallas port of the PyTorch Upsample1d module."""

    def __init__(self, dim: int, key: jax.Array, dtype=jnp.float32):
        self.dim = dim
        k = 4
        bound = 1.0 / math.sqrt(dim * k)
        kw, kb = jax.random.split(key)
        # PyTorch ConvTranspose1d weight layout: (in_channels, out_channels, K)
        self.w = jax.random.uniform(kw, (dim, dim, k), dtype, -bound, bound)
        self.b = jax.random.uniform(kb, (dim,), dtype, -bound, bound)

    def __call__(self, x: jax.Array) -> jax.Array:
        return upsample1d_pallas(x, self.w, self.b)


def ref_conv_transpose1d(x, w, b, stride=2, padding=1):
    """Pure-JAX reference matching torch.nn.ConvTranspose1d semantics."""
    B, Cin, L = x.shape
    _, Cout, K = w.shape
    Lout = (L - 1) * stride - 2 * padding + K
    buf = jnp.zeros((B, Cout, (L - 1) * stride + K), jnp.float32)
    for k in range(K):
        contrib = jnp.einsum('bil,io->bol', x.astype(jnp.float32),
                             w[:, :, k].astype(jnp.float32))
        buf = buf.at[:, :, k:k + stride * L:stride].add(contrib)
    return buf[:, :, padding:padding + Lout] + b[None, :, None]


if __name__ == "__main__":
    key = jax.random.PRNGKey(0)
    key, k_x, k_p = jax.random.split(key, 3)

    B, dim, L = 2, 4, 16
    x = jax.random.normal(k_x, (B, dim, L), jnp.float32)

    model = Upsample1dPallas(dim, k_p)
    y = jax.block_until_ready(model(x))

    y_ref = ref_conv_transpose1d(x, model.w, model.b)

    assert y.shape == (B, dim, 2 * L), y.shape
    assert jnp.allclose(y, y_ref, atol=1e-5, rtol=1e-5), \
        float(jnp.max(jnp.abs(y - y_ref)))

    print("KERNEL_OK")
</pallas_src>

<mosaic_0001>
module attributes {stable_mosaic.version = 11 : i64} {
  func.func @_upsample1d_kernel(%arg0: i32, %arg1: memref<1x18x4xf32, #tpu.memory_space<vmem>>, %arg2: memref<4x4x4xf32, #tpu.memory_space<vmem>>, %arg3: memref<1x4xf32, #tpu.memory_space<vmem>>, %arg4: memref<1x16x8xf32, #tpu.memory_space<vmem>>) attributes {dimension_semantics = [#tpu.dimension_semantics<parallel>], iteration_bounds = array<i64: 2>, scalar_prefetch = 0 : i64, scratch_operands = 0 : i64, tpu.core_type = #tpu.core_type<tc>, window_params = [{transform_indices = @transform_0, window_bounds = array<i64: 1, 18, 4>}, {pipeline_mode = #tpu.pipeline_mode<synchronous>, transform_indices = @transform_1, window_bounds = array<i64: 4, 4, 4>}, {pipeline_mode = #tpu.pipeline_mode<synchronous>, transform_indices = @transform_2, window_bounds = array<i64: 1, 4>}, {transform_indices = @transform_3, window_bounds = array<i64: 1, 16, 8>}]} {
    %c0 = arith.constant 0 : index
    %c0_0 = arith.constant 0 : index
    %c0_1 = arith.constant 0 : index
    %0 = vector.load %arg1[%c0, %c0_0, %c0_1] : memref<1x18x4xf32, #tpu.memory_space<vmem>>, vector<1x16x4xf32>
    %1 = vector.shape_cast %0 : vector<1x16x4xf32> to vector<16x4xf32>
    %c0_2 = arith.constant 0 : index
    %c1 = arith.constant 1 : index
    %c0_3 = arith.constant 0 : index
    %2 = vector.load %arg1[%c0_2, %c1, %c0_3] : memref<1x18x4xf32, #tpu.memory_space<vmem>>, vector<1x16x4xf32>
    %3 = vector.shape_cast %2 : vector<1x16x4xf32> to vector<16x4xf32>
    %c0_4 = arith.constant 0 : index
    %c2 = arith.constant 2 : index
    %c0_5 = arith.constant 0 : index
    %4 = vector.load %arg1[%c0_4, %c2, %c0_5] : memref<1x18x4xf32, #tpu.memory_space<vmem>>, vector<1x16x4xf32>
    %5 = vector.shape_cast %4 : vector<1x16x4xf32> to vector<16x4xf32>
    %c0_6 = arith.constant 0 : index
    %c0_7 = arith.constant 0 : index
    %6 = vector.load %arg3[%c0_6, %c0_7] : memref<1x4xf32, #tpu.memory_space<vmem>>, vector<1x4xf32>
    %c1_8 = arith.constant 1 : index
    %c0_9 = arith.constant 0 : index
    %c0_10 = arith.constant 0 : index
    %7 = vector.load %arg2[%c1_8, %c0_9, %c0_10] : memref<4x4x4xf32, #tpu.memory_space<vmem>>, vector<1x4x4xf32>
    %8 = vector.shape_cast %7 : vector<1x4x4xf32> to vector<4x4xf32>
    %cst = arith.constant dense<0.000000e+00> : vector<16x4xf32>
    %9 = tpu.matmul %3, %8, %cst {dimension_numbers = #tpu.dot_dimension_numbers<[1], [0], [0], [1], [0, 0, 1, 1], [], []>} : vector<16x4xf32>, vector<4x4xf32>, vector<16x4xf32> -> vector<16x4xf32>
    %c3 = arith.constant 3 : index
    %c0_11 = arith.constant 0 : index
    %c0_12 = arith.constant 0 : index
    %10 = vector.load %arg2[%c3, %c0_11, %c0_12] : memref<4x4x4xf32, #tpu.memory_space<vmem>>, vector<1x4x4xf32>
    %11 = vector.shape_cast %10 : vector<1x4x4xf32> to vector<4x4xf32>
    %cst_13 = arith.constant dense<0.000000e+00> : vector<16x4xf32>
    %12 = tpu.matmul %1, %11, %cst_13 {dimension_numbers = #tpu.dot_dimension_numbers<[1], [0], [0], [1], [0, 0, 1, 1], [], []>} : vector<16x4xf32>, vector<4x4xf32>, vector<16x4xf32> -> vector<16x4xf32>
    %13 = arith.addf %9, %12 : vector<16x4xf32>
    %14 = vector.broadcast %6 : vector<1x4xf32> to vector<16x4xf32>
    %15 = arith.addf %13, %14 : vector<16x4xf32>
    %c0_14 = arith.constant 0 : index
    %c0_15 = arith.constant 0 : index
    %c0_16 = arith.constant 0 : index
    %16 = vector.load %arg2[%c0_14, %c0_15, %c0_16] : memref<4x4x4xf32, #tpu.memory_space<vmem>>, vector<1x4x4xf32>
    %17 = vector.shape_cast %16 : vector<1x4x4xf32> to vector<4x4xf32>
    %cst_17 = arith.constant dense<0.000000e+00> : vector<16x4xf32>
    %18 = tpu.matmul %5, %17, %cst_17 {dimension_numbers = #tpu.dot_dimension_numbers<[1], [0], [0], [1], [0, 0, 1, 1], [], []>} : vector<16x4xf32>, vector<4x4xf32>, vector<16x4xf32> -> vector<16x4xf32>
    %c2_18 = arith.constant 2 : index
    %c0_19 = arith.constant 0 : index
    %c0_20 = arith.constant 0 : index
    %19 = vector.load %arg2[%c2_18, %c0_19, %c0_20] : memref<4x4x4xf32, #tpu.memory_space<vmem>>, vector<1x4x4xf32>
    %20 = vector.shape_cast %19 : vector<1x4x4xf32> to vector<4x4xf32>
    %cst_21 = arith.constant dense<0.000000e+00> : vector<16x4xf32>
    %21 = tpu.matmul %3, %20, %cst_21 {dimension_numbers = #tpu.dot_dimension_numbers<[1], [0], [0], [1], [0, 0, 1, 1], [], []>} : vector<16x4xf32>, vector<4x4xf32>, vector<16x4xf32> -> vector<16x4xf32>
    %22 = arith.addf %18, %21 : vector<16x4xf32>
    %23 = vector.broadcast %6 : vector<1x4xf32> to vector<16x4xf32>
    %24 = arith.addf %22, %23 : vector<16x4xf32>
    %25 = tpu.concatenate %15, %24 in 1 : vector<16x4xf32>, vector<16x4xf32> -> vector<16x8xf32>
    %c0_22 = arith.constant 0 : index
    %c0_23 = arith.constant 0 : index
    %c0_24 = arith.constant 0 : index
    %26 = vector.load %arg4[%c0_22, %c0_23, %c0_24] : memref<1x16x8xf32, #tpu.memory_space<vmem>>, vector<1x16x8xf32>
    %27 = vector.shape_cast %26 : vector<1x16x8xf32> to vector<16x8xf32>
    %28 = vector.shape_cast %25 : vector<16x8xf32> to vector<1x16x8xf32>
    tpu.vector_store %arg4[%c0_22, %c0_23, %c0_24], %28 {strides = array<i32>} : memref<1x16x8xf32, #tpu.memory_space<vmem>>, vector<1x16x8xf32>,
    return
  }
  func.func @transform_0(%arg0: i32) -> (i32, i32, i32) {
    %c0_i32 = arith.constant 0 : i32
    %c0_i32_0 = arith.constant 0 : i32
    %c0_i32_1 = arith.constant 0 : i32
    return %arg0, %c0_i32, %c0_i32_0 : i32, i32, i32
  }
  func.func @transform_1(%arg0: i32) -> (i32, i32, i32) {
    %c0_i32 = arith.constant 0 : i32
    %c0_i32_0 = arith.constant 0 : i32
    %c0_i32_1 = arith.constant 0 : i32
    %c0_i32_2 = arith.constant 0 : i32
    return %c0_i32, %c0_i32_0, %c0_i32_1 : i32, i32, i32
  }
  func.func @transform_2(%arg0: i32) -> (i32, i32) {
    %c0_i32 = arith.constant 0 : i32
    %c0_i32_0 = arith.constant 0 : i32
    %c0_i32_1 = arith.constant 0 : i32
    return %c0_i32, %c0_i32_0 : i32, i32
  }
  func.func @transform_3(%arg0: i32) -> (i32, i32, i32) {
    %c0_i32 = arith.constant 0 : i32
    %c0_i32_0 = arith.constant 0 : i32
    %c0_i32_1 = arith.constant 0 : i32
    return %arg0, %c0_i32, %c0_i32_0 : i32, i32, i32
  }
}

</mosaic_0001>

<llo_original>
// kernel: tpu_custom_call.1
$region0: #{tpu_custom_call.1}
  #allocation0 [shape = 'u32[]', space=smem, size = 0x4, offset = 0x4, fixed_abs, tag = 'smem constant byte address 0x4 - core index']
  #allocation1 [shape = 'u32[144,128]{1,0:T(1,128)}', space=vmem, size = 0x12000, scoped, tag = 'internal scratch']
  %s0 = inlined_call_operand.vmem [shape: f32[2,18,4], index: 0, kind: input, shape index: {}]
  %s1 = inlined_call_operand.vmem [shape: f32[4,4,4], index: 1, kind: input, shape index: {}]
  %s2 = inlined_call_operand.vmem [shape: f32[1,4], index: 2, kind: input, shape index: {}]
  %s3 = inlined_call_operand.vmem [shape: f32[2,16,8], index: 3, kind: output, shape index: {}]
  %s4 = sld [smem:[#allocation0]]
  $region45: #{tpu_custom_call.1} parent=0
    _
  %s6 = ssub.s32 1, %s4
  %s7 = scalar_select 0, %s6, %s4
  loop: start=0, step=1, limit=4
  $region2: #{tpu_custom_call.1} parent=0 // loop_pre_header
    _
  $region3: #{tpu_custom_call.1} parent=0 // loop_header
    %s9 = sphi 0, %s13
    %p10 = scmp.ge.s32.totalorder %s9, 4
    %s19 = sphi 0, %s21
    %s22 = sphi 0, %s19
    %s23 = sphi 0, %s22
    %s39 = sphi 0, %s23
    %s43 = sphi 0, %s43
    %s45 = sphi 0, %s43
    %s46 = sphi 0, %s45
    %s60 = sphi 0, %s46
    %s64 = sphi 0, %s64
    %s66 = sphi 0, %s64
    %s67 = sphi 0, %s66
    %s81 = sphi 0, %s67
    %s87 = sphi 0, %s89
    %s90 = sphi 0, %s87
    %s91 = sphi 0, %s90
    %s107 = sphi 0, %s91
  $region4: #{tpu_custom_call.1} parent=0 // loop_header_branch
    %12 = sbr.rel (%p10) target = $region8
  $region5: #{tpu_custom_call.1} parent=0 // loop_body
    %s14 = ssub.s32 %s9, 1
    %s15 = ssub.s32 %s9, 2
    %s16 = sadd.s32 %s9, 1
    %s17 = ssub.s32 %s9, %s16
    %p18 = scmp.eq.s32.totalorder %s17, 0
    %s20 = sadd.s32 %s19, 1
    %s21 = scalar_select %p18, %s19, %s20
    %p24 = pneg %p18
    %p25 = scmp.eq.s32.totalorder %s9, 1
    %p26 = por %p24, %p25
    %p27 = scmp.ne.s32.totalorder %s19, %s22
    %p28 = scmp.eq.s32.totalorder %s9, 0
    %p29 = por %p27, %p28
    %p30 = scmp.ne.s32.totalorder %s19, %s22
    %p31 = scmp.eq.s32.totalorder %s14, 1
    %p32 = por %p30, %p31
    %p33 = scmp.ne.s32.totalorder %s22, %s23
    %p34 = scmp.eq.s32.totalorder %s14, 0
    %p35 = por %p33, %p34
    %p36 = scmp.ne.s32.totalorder %s22, %s23
    %p37 = scmp.eq.s32.totalorder %s15, 1
    %p38 = por %p36, %p37
    %p40 = scmp.ne.s32.totalorder %s23, %s39
    %p41 = scmp.eq.s32.totalorder %s15, 0
    %p42 = por %p40, %p41
    %s44 = sadd.s32 %s43, 1
    %p47 = scmp.eq.s32.totalorder %s9, 1
    %p48 = scmp.ne.s32.totalorder %s43, %s45
    %p49 = scmp.eq.s32.totalorder %s9, 0
    %p50 = por %p48, %p49
    %p51 = scmp.ne.s32.totalorder %s43, %s45
    %p52 = scmp.eq.s32.totalorder %s14, 1
    %p53 = por %p51, %p52
    %p54 = scmp.ne.s32.totalorder %s45, %s46
    %p55 = scmp.eq.s32.totalorder %s14, 0
    %p56 = por %p54, %p55
    %p57 = scmp.ne.s32.totalorder %s45, %s46
    %p58 = scmp.eq.s32.totalorder %s15, 1
    %p59 = por %p57, %p58
    %p61 = scmp.ne.s32.totalorder %s46, %s60
    %p62 = scmp.eq.s32.totalorder %s15, 0
    %p63 = por %p61, %p62
    %s65 = sadd.s32 %s64, 1
    %p68 = scmp.eq.s32.totalorder %s9, 1
    %p69 = scmp.ne.s32.totalorder %s64, %s66
    %p70 = scmp.eq.s32.totalorder %s9, 0
    %p71 = por %p69, %p70
    %p72 = scmp.ne.s32.totalorder %s64, %s66
    %p73 = scmp.eq.s32.totalorder %s14, 1
    %p74 = por %p72, %p73
    %p75 = scmp.ne.s32.totalorder %s66, %s67
    %p76 = scmp.eq.s32.totalorder %s14, 0
    %p77 = por %p75, %p76
    %p78 = scmp.ne.s32.totalorder %s66, %s67
    %p79 = scmp.eq.s32.totalorder %s15, 1
    %p80 = por %p78, %p79
    %p82 = scmp.ne.s32.totalorder %s67, %s81
    %p83 = scmp.eq.s32.totalorder %s15, 0
    %p84 = por %p82, %p83
    %s85 = ssub.s32 %s9, %s16
    %p86 = scmp.eq.s32.totalorder %s85, 0
    %s88 = sadd.s32 %s87, 1
    %s89 = scalar_select %p86, %s87, %s88
    %p92 = pneg %p86
    %p93 = scmp.eq.s32.totalorder %s9, 1
    %p94 = por %p92, %p93
    %p95 = scmp.ne.s32.totalorder %s87, %s90
    %p96 = scmp.eq.s32.totalorder %s9, 0
    %p97 = por %p95, %p96
    %p98 = scmp.ne.s32.totalorder %s87, %s90
    %p99 = scmp.eq.s32.totalorder %s14, 1
    %p100 = por %p98, %p99
    %p101 = scmp.ne.s32.totalorder %s90, %s91
    %p102 = scmp.eq.s32.totalorder %s14, 0
    %p103 = por %p101, %p102
    %p104 = scmp.ne.s32.totalorder %s90, %s91
    %p105 = scmp.eq.s32.totalorder %s15, 1
    %p106 = por %p104, %p105
    %p108 = scmp.ne.s32.totalorder %s91, %s107
    %p109 = scmp.eq.s32.totalorder %s15, 0
    %p110 = por %p108, %p109
    %p111 = scmp.le.s32.totalorder 1, %s9
    %p112 = scmp.lt.s32.totalorder %s9, 3
    %p113 = pnand %p111, %p112
    %p114 = pneg %p113
    // Predicated region
    $region9: #{tpu_custom_call.1} parent=5 // pred_check
      _
    $region10: #{tpu_custom_call.1} parent=5 // pred_check_branch
      %116 = sbr.rel (%p113) target = $region12
    $region11: #{tpu_custom_call.1} parent=5 // pred_region
      %s117 = ssub.s32 %s9, 1
      // Predicated region
      $region13: #{tpu_custom_call.1} parent=11 // pred_check
        %p118 = pneg %p56
      $region14: #{tpu_custom_call.1} parent=11 // pred_check_branch
        %120 = sbr.rel (%p118) target = $region16
      $region15: #{tpu_custom_call.1} parent=11 // pred_region
        _
      $region16: #{tpu_custom_call.1} parent=11 // pred_fallthru
        _
      // Predicated region
      $region17: #{tpu_custom_call.1} parent=11 // pred_check
        %p121 = pneg %p77
      $region18: #{tpu_custom_call.1} parent=11 // pred_check_branch
        %123 = sbr.rel (%p121) target = $region20
      $region19: #{tpu_custom_call.1} parent=11 // pred_region
        _
      $region20: #{tpu_custom_call.1} parent=11 // pred_fallthru
        _
    $region12: #{tpu_custom_call.1} parent=5 // pred_fallthru
      _
    %p124 = scmp.lt.s32.totalorder %s9, 2
    // Predicated region
    $region21: #{tpu_custom_call.1} parent=5 // pred_check
      %p125 = pneg %p124
    $region22: #{tpu_custom_call.1} parent=5 // pred_check_branch
      %127 = sbr.rel (%p125) target = $region24
    $region23: #{tpu_custom_call.1} parent=5 // pred_region
      // Predicated region
      $region25: #{tpu_custom_call.1} parent=23 // pred_check
        %p128 = pneg %p29
      $region26: #{tpu_custom_call.1} parent=23 // pred_check_branch
        %130 = sbr.rel (%p128) target = $region28
      $region27: #{tpu_custom_call.1} parent=23 // pred_region
        %p131 = scmp.lt.s32.totalorder %s9, 1
        %s132 = scalar_select %p131, %s9, 1
        %s133 = smul.addr %s132, 3
        %s134 = smul.addr %s133, 8
        %s135 = scalar_lea.vmem %s0, %s134
      $region28: #{tpu_custom_call.1} parent=23 // pred_fallthru
        _
    $region24: #{tpu_custom_call.1} parent=5 // pred_fallthru
      _
    %p136 = scmp.le.s32.totalorder 1, %s9
    %p137 = scmp.lt.s32.totalorder %s9, 3
    %p138 = pnand %p136, %p137
    %p139 = pneg %p138
    // Predicated region
    $region29: #{tpu_custom_call.1} parent=5 // pred_check
      _
    $region30: #{tpu_custom_call.1} parent=5 // pred_check_branch
      %141 = sbr.rel (%p138) target = $region32
    $region31: #{tpu_custom_call.1} parent=5 // pred_region
      %s142 = ssub.s32 %s9, 1
      %p143 = scmp.lt.s32.totalorder %s14, 1
      %s144 = scalar_select %p143, %s14, 1
      %s145 = smul.addr %s144, 3
      %s146 = smul.addr %s145, 8
      %s147 = scalar_lea.vmem %s0, %s146
      %p148 = pneg %p35
      %p149 = pneg %p32
      %p150 = pneg %p56
      %p151 = pneg %p53
      %p152 = pneg %p77
      %p153 = pneg %p74
      %p154 = pneg %p103
      %p155 = pneg %p100
      %p156 = scmp.lt.s32.totalorder %s14, 1
      %s157 = scalar_select %p156, %s14, 1
      %s158 = smul.addr %s157, 2
      %s159 = smul.addr %s158, 8
      %s160 = scalar_lea.vmem %s3, %s159
      %p161 = scmp.lt.s32.totalorder %s14, 1
      %s162 = scalar_select %p161, %s14, 1
      %s163 = smul.addr %s162, 3
      %s164 = smul.addr %s163, 8
      %s165 = scalar_lea.vmem %s0, %s164
      %p166 = scmp.lt.s32.totalorder %s14, 1
      %s167 = scalar_select %p166, %s14, 1
      %s168 = smul.addr %s167, 2
      %s169 = smul.addr %s168, 8
      %s170 = scalar_lea.vmem %s3, %s169
      %v171 = vld [vmem:[%s165] sm:$0xff]
      %v172 = vld [vmem:[%s165 + $0x8] sm:$0xff]
      %v173 = vld [vmem:[%s165 + $0x1] sm:$0xff]
      %v174 = vld [vmem:[%s165 + $0x9] sm:$0xff]
      %v175 = vld [vmem:[%s165 + $0x2] sm:$0xff]
      %v176 = vld [vmem:[%s165 + $0xa] sm:$0xff]
      %v177 = vld [vmem:[%s2] sm:$0x1]
      %s178 = scalar_lea.vmem %s1, 4
      %v179 = vld [vmem:[%s178] sm:$0xf]
      %s180 = scalar_lea.vmem %s1, 12
      %v181 = vld [vmem:[%s180] sm:$0xf]
      %vm182 = vcmask 31744
      %v184 = vsel %vm182, %v171, 0
      %v187 = vsel %vm182, %v172, 0
      %vm189 = vcmask 1043456
      %v191 = vsel %vm189, %v181, 0
      %193 = vmatprep.subr.mxu0 0.0
      %194 = vmatpush1.msra.mxu0 %v191
      %195 = vmatprep.subr.mxu0 0.0
      %196 = vmatpush1.msra.mxu0 0.0
      %197 = vmatprep.subr.mxu0 0.0
      %198 = vmatpush1.msra.mxu0 0.0
      %199 = vmatprep.subr.mxu0 0.0
      %200 = vmatpush1.msra.mxu0 0.0
      %201 = vmatprep.subr.mxu0 0.0
      %202 = vmatpush1.msra.mxu0 0.0
      %203 = vmatprep.subr.mxu0 0.0
      %204 = vmatpush1.msra.mxu0 0.0
      %205 = vmatprep.subr.mxu0 0.0
      %206 = vmatpush1.msra.mxu0 0.0
      %207 = vmatprep.subr.mxu0 0.0
      %208 = vmatpush1.msra.mxu0 0.0
      %209 = vmatprep.subr.mxu0 0.0
      %210 = vmatpush1.msra.mxu0 0.0
      %211 = vmatprep.subr.mxu0 0.0
      %212 = vmatpush1.msra.mxu0 0.0
      %213 = vmatprep.subr.mxu0 0.0
      %214 = vmatpush1.msra.mxu0 0.0
      %215 = vmatprep.subr.mxu0 0.0
      %216 = vmatpush1.msra.mxu0 0.0
      %217 = vmatprep.subr.mxu0 0.0
      %218 = vmatpush1.msra.mxu0 0.0
      %219 = vmatprep.subr.mxu0 0.0
      %220 = vmatpush1.msra.mxu0 0.0
      %221 = vmatprep.subr.mxu0 0.0
      %222 = vmatpush1.msra.mxu0 0.0
      %223 = vmatprep.subr.mxu0 0.0
      %224 = vmatpush1.msra.mxu0 0.0
      %225 = vmatprep.subr.mxu0 0.0
      %226 = vmatpush1.msra.mxu0 0.0
      %227 = vmatprep.subr.mxu0 0.0
      %228 = vmatpush1.msra.mxu0 0.0
      %229 = vmatprep.subr.mxu0 0.0
      %230 = vmatpush1.msra.mxu0 0.0
      %231 = vmatprep.subr.mxu0 0.0
      %232 = vmatpush1.msra.mxu0 0.0
      %233 = vmatprep.subr.mxu0 0.0
      %234 = vmatpush1.msra.mxu0 0.0
      %235 = vmatprep.subr.mxu0 0.0
      %236 = vmatpush1.msra.mxu0 0.0
      %237 = vmatprep.subr.mxu0 0.0
      %238 = vmatpush1.msra.mxu0 0.0
      %239 = vmatprep.subr.mxu0 0.0
      %240 = vmatpush1.msra.mxu0 0.0
      %241 = vmatprep.subr.mxu0 0.0
      %242 = vmatpush1.msra.mxu0 0.0
      %243 = vmatprep.subr.mxu0 0.0
      %244 = vmatpush1.msra.mxu0 0.0
      %245 = vmatprep.subr.mxu0 0.0
      %246 = vmatpush1.msra.mxu0 0.0
      %247 = vmatprep.subr.mxu0 0.0
      %248 = vmatpush1.msra.mxu0 0.0
      %249 = vmatprep.subr.mxu0 0.0
      %250 = vmatpush1.msra.mxu0 0.0
      %251 = vmatprep.subr.mxu0 0.0
      %252 = vmatpush1.msra.mxu0 0.0
      %253 = vmatprep.subr.mxu0 0.0
      %254 = vmatpush1.msra.mxu0 0.0
      %255 = vmatprep.subr.mxu0 0.0
      %256 = vmatpush1.msra.mxu0 0.0
      %257 = vmatprep.mubr.f32.mxu0 0.0
      %258 = vmatmul.mubr.f32.gmra.mrb[0].mxu0 %v184
      %v259 = vpop.f32.mrb[0].mxu0
      %v260 = vadd.f32 0.0, %v259
      %v261 = vpop.f32.mrb[0].mxu0
      %262 = vmatprep.mubr.f32.mxu0 0.0
      %263 = vmatmul.mubr.f32.gmra.mrb[0].mxu0 %v187
      %v264 = vpop.f32.mrb[0].mxu0
      %v265 = vadd.f32 0.0, %v264
      %v266 = vpop.f32.mrb[0].mxu0
      %267 = vdwg.mxu0
      %v269 = vsel %vm182, %v173, 0
      %v272 = vsel %vm182, %v174, 0
      %v275 = vsel %vm189, %v179, 0
      %277 = vmatprep.subr.mxu0 0.0
      %278 = vmatpush1.msra.mxu0 %v275
      %279 = vmatprep.subr.mxu0 0.0
      %280 = vmatpush1.msra.mxu0 0.0
      %281 = vmatprep.subr.mxu0 0.0
      %282 = vmatpush1.msra.mxu0 0.0
      %283 = vmatprep.subr.mxu0 0.0
      %284 = vmatpush1.msra.mxu0 0.0
      %285 = vmatprep.subr.mxu0 0.0
      %286 = vmatpush1.msra.mxu0 0.0
      %287 = vmatprep.subr.mxu0 0.0
      %288 = vmatpush1.msra.mxu0 0.0
      %289 = vmatprep.subr.mxu0 0.0
      %290 = vmatpush1.msra.mxu0 0.0
      %291 = vmatprep.subr.mxu0 0.0
      %292 = vmatpush1.msra.mxu0 0.0
      %293 = vmatprep.subr.mxu0 0.0
      %294 = vmatpush1.msra.mxu0 0.0
      %295 = vmatprep.subr.mxu0 0.0
      %296 = vmatpush1.msra.mxu0 0.0
      %297 = vmatprep.subr.mxu0 0.0
      %298 = vmatpush1.msra.mxu0 0.0
      %299 = vmatprep.subr.mxu0 0.0
      %300 = vmatpush1.msra.mxu0 0.0
      %301 = vmatprep.subr.mxu0 0.0
      %302 = vmatpush1.msra.mxu0 0.0
      %303 = vmatprep.subr.mxu0 0.0
      %304 = vmatpush1.msra.mxu0 0.0
      %305 = vmatprep.subr.mxu0 0.0
      %306 = vmatpush1.msra.mxu0 0.0
      %307 = vmatprep.subr.mxu0 0.0
      %308 = vmatpush1.msra.mxu0 0.0
      %309 = vmatprep.subr.mxu0 0.0
      %310 = vmatpush1.msra.mxu0 0.0
      %311 = vmatprep.subr.mxu0 0.0
      %312 = vmatpush1.msra.mxu0 0.0
      %313 = vmatprep.subr.mxu0 0.0
      %314 = vmatpush1.msra.mxu0 0.0
      %315 = vmatprep.subr.mxu0 0.0
      %316 = vmatpush1.msra.mxu0 0.0
      %317 = vmatprep.subr.mxu0 0.0
      %318 = vmatpush1.msra.mxu0 0.0
      %319 = vmatprep.subr.mxu0 0.0
      %320 = vmatpush1.msra.mxu0 0.0
      %321 = vmatprep.subr.mxu0 0.0
      %322 = vmatpush1.msra.mxu0 0.0
      %323 = vmatprep.subr.mxu0 0.0
      %324 = vmatpush1.msra.mxu0 0.0
      %325 = vmatprep.subr.mxu0 0.0
      %326 = vmatpush1.msra.mxu0 0.0
      %327 = vmatprep.subr.mxu0 0.0
      %328 = vmatpush1.msra.mxu0 0.0
      %329 = vmatprep.subr.mxu0 0.0
      %330 = vmatpush1.msra.mxu0 0.0
      %331 = vmatprep.subr.mxu0 0.0
      %332 = vmatpush1.msra.mxu0 0.0
      %333 = vmatprep.subr.mxu0 0.0
      %334 = vmatpush1.msra.mxu0 0.0
      %335 = vmatprep.subr.mxu0 0.0
      %336 = vmatpush1.msra.mxu0 0.0
      %337 = vmatprep.subr.mxu0 0.0
      %338 = vmatpush1.msra.mxu0 0.0
      %339 = vmatprep.subr.mxu0 0.0
      %340 = vmatpush1.msra.mxu0 0.0
      %341 = vmatprep.mubr.f32.mxu0 0.0
      %342 = vmatmul.mubr.f32.gmra.mrb[0].mxu0 %v269
      %v343 = vpop.f32.mrb[0].mxu0
      %v344 = vadd.f32 %v260, %v343
      %v345 = vpop.f32.mrb[0].mxu0
      %346 = vmatprep.mubr.f32.mxu0 0.0
      %347 = vmatmul.mubr.f32.gmra.mrb[0].mxu0 %v272
      %v348 = vpop.f32.mrb[0].mxu0
      %v349 = vadd.f32 %v265, %v348
      %v350 = vpop.f32.mrb[0].mxu0
      %351 = vdwg.mxu0
      %v353 = vlaneseq
      %v354 = vshrl.u32 %v353, 7
      %v355 = vsub.s32 0, %v354
      %v356 = vrot.slane %v177, %v355
      %v358 = vadd.f32 %v344, %v356
      %v359 = vadd.f32 %v349, %v356
      %v360 = vld [vmem:[%s1] sm:$0xf]
      %s361 = scalar_lea.vmem %s1, 8
      %v362 = vld [vmem:[%s361] sm:$0xf]
      %v364 = vsel %vm189, %v362, 0
      %366 = vmatprep.subr.mxu0 0.0
      %367 = vmatpush1.msra.mxu0 %v364
      %368 = vmatprep.subr.mxu0 0.0
      %369 = vmatpush1.msra.mxu0 0.0
      %370 = vmatprep.subr.mxu0 0.0
      %371 = vmatpush1.msra.mxu0 0.0
      %372 = vmatprep.subr.mxu0 0.0
      %373 = vmatpush1.msra.mxu0 0.0
      %374 = vmatprep.subr.mxu0 0.0
      %375 = vmatpush1.msra.mxu0 0.0
      %376 = vmatprep.subr.mxu0 0.0
      %377 = vmatpush1.msra.mxu0 0.0
      %378 = vmatprep.subr.mxu0 0.0
      %379 = vmatpush1.msra.mxu0 0.0
      %380 = vmatprep.subr.mxu0 0.0
      %381 = vmatpush1.msra.mxu0 0.0
      %382 = vmatprep.subr.mxu0 0.0
      %383 = vmatpush1.msra.mxu0 0.0
      %384 = vmatprep.subr.mxu0 0.0
      %385 = vmatpush1.msra.mxu0 0.0
      %386 = vmatprep.subr.mxu0 0.0
      %387 = vmatpush1.msra.mxu0 0.0
      %388 = vmatprep.subr.mxu0 0.0
      %389 = vmatpush1.msra.mxu0 0.0
      %390 = vmatprep.subr.mxu0 0.0
      %391 = vmatpush1.msra.mxu0 0.0
      %392 = vmatprep.subr.mxu0 0.0
      %393 = vmatpush1.msra.mxu0 0.0
      %394 = vmatprep.subr.mxu0 0.0
      %395 = vmatpush1.msra.mxu0 0.0
      %396 = vmatprep.subr.mxu0 0.0
      %397 = vmatpush1.msra.mxu0 0.0
      %398 = vmatprep.subr.mxu0 0.0
      %399 = vmatpush1.msra.mxu0 0.0
      %400 = vmatprep.subr.mxu0 0.0
      %401 = vmatpush1.msra.mxu0 0.0
      %402 = vmatprep.subr.mxu0 0.0
      %403 = vmatpush1.msra.mxu0 0.0
      %404 = vmatprep.subr.mxu0 0.0
      %405 = vmatpush1.msra.mxu0 0.0
      %406 = vmatprep.subr.mxu0 0.0
      %407 = vmatpush1.msra.mxu0 0.0
      %408 = vmatprep.subr.mxu0 0.0
      %409 = vmatpush1.msra.mxu0 0.0
      %410 = vmatprep.subr.mxu0 0.0
      %411 = vmatpush1.msra.mxu0 0.0
      %412 = vmatprep.subr.mxu0 0.0
      %413 = vmatpush1.msra.mxu0 0.0
      %414 = vmatprep.subr.mxu0 0.0
      %415 = vmatpush1.msra.mxu0 0.0
      %416 = vmatprep.subr.mxu0 0.0
      %417 = vmatpush1.msra.mxu0 0.0
      %418 = vmatprep.subr.mxu0 0.0
      %419 = vmatpush1.msra.mxu0 0.0
      %420 = vmatprep.subr.mxu0 0.0
      %421 = vmatpush1.msra.mxu0 0.0
      %422 = vmatprep.subr.mxu0 0.0
      %423 = vmatpush1.msra.mxu0 0.0
      %424 = vmatprep.subr.mxu0 0.0
      %425 = vmatpush1.msra.mxu0 0.0
      %426 = vmatprep.subr.mxu0 0.0
      %427 = vmatpush1.msra.mxu0 0.0
      %428 = vmatprep.subr.mxu0 0.0
      %429 = vmatpush1.msra.mxu0 0.0
      %430 = vmatprep.mubr.f32.mxu0 0.0
      %431 = vmatmul.mubr.f32.gmra.mrb[0].mxu0 %v269
      %v432 = vpop.f32.mrb[0].mxu0
      %v433 = vadd.f32 0.0, %v432
      %v434 = vpop.f32.mrb[0].mxu0
      %435 = vmatprep.mubr.f32.mxu0 0.0
      %436 = vmatmul.mubr.f32.gmra.mrb[0].mxu0 %v272
      %v437 = vpop.f32.mrb[0].mxu0
      %v438 = vadd.f32 0.0, %v437
      %v439 = vpop.f32.mrb[0].mxu0
      %440 = vdwg.mxu0
      %v442 = vsel %vm182, %v175, 0
      %v445 = vsel %vm182, %v176, 0
      %v448 = vsel %vm189, %v360, 0
      %450 = vmatprep.subr.mxu0 0.0
      %451 = vmatpush1.msra.mxu0 %v448
      %452 = vmatprep.subr.mxu0 0.0
      %453 = vmatpush1.msra.mxu0 0.0
      %454 = vmatprep.subr.mxu0 0.0
      %455 = vmatpush1.msra.mxu0 0.0
      %456 = vmatprep.subr.mxu0 0.0
      %457 = vmatpush1.msra.mxu0 0.0
      %458 = vmatprep.subr.mxu0 0.0
      %459 = vmatpush1.msra.mxu0 0.0
      %460 = vmatprep.subr.mxu0 0.0
      %461 = vmatpush1.msra.mxu0 0.0
      %462 = vmatprep.subr.mxu0 0.0
      %463 = vmatpush1.msra.mxu0 0.0
      %464 = vmatprep.subr.mxu0 0.0
      %465 = vmatpush1.msra.mxu0 0.0
      %466 = vmatprep.subr.mxu0 0.0
      %467 = vmatpush1.msra.mxu0 0.0
      %468 = vmatprep.subr.mxu0 0.0
      %469 = vmatpush1.msra.mxu0 0.0
      %470 = vmatprep.subr.mxu0 0.0
      %471 = vmatpush1.msra.mxu0 0.0
      %472 = vmatprep.subr.mxu0 0.0
      %473 = vmatpush1.msra.mxu0 0.0
      %474 = vmatprep.subr.mxu0 0.0
      %475 = vmatpush1.msra.mxu0 0.0
      %476 = vmatprep.subr.mxu0 0.0
      %477 = vmatpush1.msra.mxu0 0.0
      %478 = vmatprep.subr.mxu0 0.0
      %479 = vmatpush1.msra.mxu0 0.0
      %480 = vmatprep.subr.mxu0 0.0
      %481 = vmatpush1.msra.mxu0 0.0
      %482 = vmatprep.subr.mxu0 0.0
      %483 = vmatpush1.msra.mxu0 0.0
      %484 = vmatprep.subr.mxu0 0.0
      %485 = vmatpush1.msra.mxu0 0.0
      %486 = vmatprep.subr.mxu0 0.0
      %487 = vmatpush1.msra.mxu0 0.0
      %488 = vmatprep.subr.mxu0 0.0
      %489 = vmatpush1.msra.mxu0 0.0
      %490 = vmatprep.subr.mxu0 0.0
      %491 = vmatpush1.msra.mxu0 0.0
      %492 = vmatprep.subr.mxu0 0.0
      %493 = vmatpush1.msra.mxu0 0.0
      %494 = vmatprep.subr.mxu0 0.0
      %495 = vmatpush1.msra.mxu0 0.0
      %496 = vmatprep.subr.mxu0 0.0
      %497 = vmatpush1.msra.mxu0 0.0
      %498 = vmatprep.subr.mxu0 0.0
      %499 = vmatpush1.msra.mxu0 0.0
      %500 = vmatprep.subr.mxu0 0.0
      %501 = vmatpush1.msra.mxu0 0.0
      %502 = vmatprep.subr.mxu0 0.0
      %503 = vmatpush1.msra.mxu0 0.0
      %504 = vmatprep.subr.mxu0 0.0
      %505 = vmatpush1.msra.mxu0 0.0
      %506 = vmatprep.subr.mxu0 0.0
      %507 = vmatpush1.msra.mxu0 0.0
      %508 = vmatprep.subr.mxu0 0.0
      %509 = vmatpush1.msra.mxu0 0.0
      %510 = vmatprep.subr.mxu0 0.0
      %511 = vmatpush1.msra.mxu0 0.0
      %512 = vmatprep.subr.mxu0 0.0
      %513 = vmatpush1.msra.mxu0 0.0
      %514 = vmatprep.mubr.f32.mxu0 0.0
      %515 = vmatmul.mubr.f32.gmra.mrb[0].mxu0 %v442
      %v516 = vpop.f32.mrb[0].mxu0
      %v517 = vadd.f32 %v433, %v516
      %v518 = vpop.f32.mrb[0].mxu0
      %519 = vmatprep.mubr.f32.mxu0 0.0
      %520 = vmatmul.mubr.f32.gmra.mrb[0].mxu0 %v445
      %v521 = vpop.f32.mrb[0].mxu0
      %v522 = vadd.f32 %v438, %v521
      %v523 = vpop.f32.mrb[0].mxu0
      %524 = vdwg.mxu0
      %v525 = vadd.f32 %v517, %v356
      %v526 = vadd.f32 %v522, %v356
      %529 = vrot.lane.b32.xlu0 %v525, 4
      %v530 = vpop.permute.xlu0 %529
      %531 = vrot.lane.b32.xlu0 %v526, 4
      %v532 = vpop.permute.xlu0 %531
      %v535 = vsel %vm182, %v358, %v530
      %v536 = vsel %vm182, %v359, %v532
      %vm537 = vcmask 64512
      %538 = vst.msk [vmem:[%s170] sm:$0xff] %vm537, %v535
      %539 = vst.msk [vmem:[%s170 + $0x8] sm:$0xff] %vm537, %v536
      %p540 = scmp.lt.s32.totalorder %s14, 1
      %s541 = scalar_select %p540, %s14, 1
      %s542 = smul.addr %s541, 2
      %s543 = smul.addr %s542, 8
      %s544 = scalar_lea.vmem %s3, %s543
      // Predicated region
      $region33: #{tpu_custom_call.1} parent=31 // pred_check
        %p545 = pneg %p100
      $region34: #{tpu_custom_call.1} parent=31 // pred_check_branch
        %547 = sbr.rel (%p545) target = $region36
      $region35: #{tpu_custom_call.1} parent=31 // pred_region
        _
      $region36: #{tpu_custom_call.1} parent=31 // pred_fallthru
        _
    $region32: #{tpu_custom_call.1} parent=5 // pred_fallthru
      _
    %p548 = scmp.le.s32.totalorder 2, %s9
    // Predicated region
    $region37: #{tpu_custom_call.1} parent=5 // pred_check
      %p549 = pneg %p548
    $region38: #{tpu_custom_call.1} parent=5 // pred_check_branch
      %551 = sbr.rel (%p549) target = $region40
    $region39: #{tpu_custom_call.1} parent=5 // pred_region
      %s552 = ssub.s32 %s9, 2
      // Predicated region
      $region41: #{tpu_custom_call.1} parent=39 // pred_check
        %p553 = pneg %p106
      $region42: #{tpu_custom_call.1} parent=39 // pred_check_branch
        %555 = sbr.rel (%p553) target = $region44
      $region43: #{tpu_custom_call.1} parent=39 // pred_region
        %p556 = scmp.lt.s32.totalorder %s15, 1
        %s557 = scalar_select %p556, %s15, 1
        %s558 = smul.addr %s557, 2
        %s559 = smul.addr %s558, 8
        %s560 = scalar_lea.vmem %s3, %s559
      $region44: #{tpu_custom_call.1} parent=39 // pred_fallthru
        _
    $region40: #{tpu_custom_call.1} parent=5 // pred_fallthru
      _
  $region6: #{tpu_custom_call.1} parent=0 // loop_footer
    %s13 = sadd.s32 1, %s9
  $region7: #{tpu_custom_call.1} parent=0 // loop_footer_branch
    %8 = sbr.rel target = $region3
  $region8: #{tpu_custom_call.1} parent=0 // loop_exit
    _

</llo_original>
